<compile_context>
chip_gen: v5e
topology: v5e:2x2
jax: 0.10.0
libtpu: 0.0.40
codegen_flags: <defaults>
</compile_context>

<pallas_src>
import math

import jax
import jax.numpy as jnp
from jax.experimental import pallas as pl
from jax.experimental.pallas import tpu as pltpu


# ----------------------------- Pallas kernels ------------------------------

def _linear_kernel(x_ref, wt_ref, b_ref, o_ref):
    # x_ref: (TN, E_in) bf16   wt_ref: (E_in, E_out) bf16   b_ref: (1, E_out) f32
    x = x_ref[...].astype(wt_ref.dtype)
    y = jnp.dot(x, wt_ref[...], preferred_element_type=jnp.float32) + b_ref[...]
    o_ref[...] = y.astype(o_ref.dtype)


def linear(x2d, wt, b2, out_dtype, *, tile_n=1024):
    """y = x2d @ wt + b2.  x2d: (N, E_in), wt: (E_in, E_out), b2: (1, E_out).

    NOTE: when N % tile_n != 0 the padded rows of the last block compute on
    undefined data; this is safe only because the contraction is along E_in
    (fully resident) and out-of-bounds rows are masked on the store.  Do not
    add K-tiling here without revisiting that assumption.
    """
    n, e_in = x2d.shape
    e_out = wt.shape[1]
    tn = n if n <= tile_n else tile_n          # full-N or a multiple of 8
    return pl.pallas_call(
        _linear_kernel,
        out_shape=jax.ShapeDtypeStruct((n, e_out), out_dtype),
        grid_spec=pltpu.PrefetchScalarGridSpec(
            num_scalar_prefetch=0,
            grid=(pl.cdiv(n, tn),),
            in_specs=[
                pl.BlockSpec((tn, e_in), lambda i: (i, 0)),
                pl.BlockSpec((e_in, e_out), lambda i: (0, 0)),
                pl.BlockSpec((1, e_out), lambda i: (0, 0)),
            ],
            out_specs=pl.BlockSpec((tn, e_out), lambda i: (i, 0)),
        ),
        compiler_params=pltpu.CompilerParams(
            dimension_semantics=("parallel",),
            vmem_limit_bytes=48 * 1024 * 1024),
    )(x2d, wt, b2)


def _row_attn_kernel(q_ref, k_ref, v_ref, ctx_ref, probs_ref):
    # q_ref  : (1, 1, Cq, R*D) bf16  (query-column tile for one (batch, head))
    # k_ref  : (1, 1, C,  R*D) bf16
    # v_ref  : (1, 1, C,  R*D) bf16
    # ctx_ref: (1, 1, Cq, R*D) bf16
    # probs_ref: (1, 1, Cq, C) f32   ('hnij' block: i = query col, j = key col)
    q = q_ref[0, 0]                                       # (Cq, R*D)
    k = k_ref[0, 0]                                       # (C,  R*D)
    # Contract r AND d in one MXU matmul (K-dim = R*D): the row-sum of
    # 'rinhd,rjnhd->hnij' happens in the accumulator for free.
    logits = jax.lax.dot_general(
        q, k, dimension_numbers=(((1,), (1,)), ((), ())),
        preferred_element_type=jnp.float32)               # (Cq, C) f32
    m = jnp.max(logits, axis=-1, keepdims=True)
    p = jnp.exp(logits - m)
    denom = jnp.sum(p, axis=-1, keepdims=True)
    probs = p / denom                                     # exact softmax rows
    probs_ref[0, 0] = probs.astype(probs_ref.dtype)
    # 'hnij,rjnhd->rinhd' for this (b, h): one (Cq, C) @ (C, R*D) matmul.
    ctx = jnp.dot(probs.astype(v_ref.dtype), v_ref[0, 0],
                  preferred_element_type=jnp.float32)     # (Cq, R*D) f32
    ctx_ref[0, 0] = ctx.astype(ctx_ref.dtype)


def row_attention(q_m, k_m, v_m, *, cq_tile=256):
    """q_m/k_m/v_m: (B, H, C, R*D) bf16 (head-major, scaling folded into q).

    Returns ctx (B, H, C, R*D) bf16 and probs (H, B, C, C) f32 ('hnij')."""
    B, H, C, RD = q_m.shape
    cq = C if C <= cq_tile else cq_tile        # full C, or an MXU-friendly 256
    grid = (B, H, pl.cdiv(C, cq))
    return pl.pallas_call(
        _row_attn_kernel,
        out_shape=(jax.ShapeDtypeStruct((B, H, C, RD), q_m.dtype),
                   jax.ShapeDtypeStruct((H, B, C, C), jnp.float32)),
        grid_spec=pltpu.PrefetchScalarGridSpec(
            num_scalar_prefetch=0,
            grid=grid,
            in_specs=[
                pl.BlockSpec((1, 1, cq, RD), lambda b, h, i: (b, h, i, 0)),
                pl.BlockSpec((1, 1, C, RD), lambda b, h, i: (b, h, 0, 0)),
                pl.BlockSpec((1, 1, C, RD), lambda b, h, i: (b, h, 0, 0)),
            ],
            out_specs=(
                pl.BlockSpec((1, 1, cq, RD), lambda b, h, i: (b, h, i, 0)),
                pl.BlockSpec((1, 1, cq, C), lambda b, h, i: (h, b, i, 0)),
            ),
        ),
        compiler_params=pltpu.CompilerParams(
            dimension_semantics=("parallel", "parallel", "parallel"),
            vmem_limit_bytes=48 * 1024 * 1024),
    )(q_m, k_m, v_m)


# ---------------------------- Module wrapper --------------------------------

class RowSelfAttentionPallas:
    """Forward-only reimplementation of RowSelfAttention (dropout=0, no masks)."""

    def __init__(self, embed_dim, num_heads, key):
        assert embed_dim % num_heads == 0
        self.embed_dim = embed_dim
        self.num_heads = num_heads
        self.head_dim = embed_dim // num_heads
        self.scaling = self.head_dim ** (-0.5)
        bound = 1.0 / math.sqrt(embed_dim)
        ks = jax.random.split(key, 8)

        def init_linear(kw, kb):
            w = jax.random.uniform(kw, (embed_dim, embed_dim), jnp.float32,
                                   -bound, bound)
            b = jax.random.uniform(kb, (embed_dim,), jnp.float32, -bound, bound)
            return w, b

        self.q_w, self.q_b = init_linear(ks[0], ks[1])
        self.k_w, self.k_b = init_linear(ks[2], ks[3])
        self.v_w, self.v_b = init_linear(ks[4], ks[5])
        self.o_w, self.o_b = init_linear(ks[6], ks[7])
        # TODO(synk): dropout is identity at inference (p=0); not implemented.
        # TODO(synk): self_attn_mask / self_attn_padding_mask paths not implemented.

    def __call__(self, x):
        R, C, B, E = x.shape
        H, D = self.num_heads, self.head_dim
        scaling = self.scaling / math.sqrt(R)            # align_scaling

        # Fused QKV weights (PyTorch y = x @ W.T + b); align_scaling folded into Q.
        wt_qkv = jnp.concatenate(
            [self.q_w.T * scaling, self.k_w.T, self.v_w.T], axis=1
        ).astype(jnp.bfloat16)                           # (E, 3E)
        b_qkv = jnp.concatenate(
            [self.q_b * scaling, self.k_b, self.v_b]).reshape(1, 3 * E)

        # Fused QKV projection, token order (r, c, b) -- no input transpose.
        x2d = x.astype(jnp.bfloat16).reshape(R * C * B, E)
        qkv = linear(x2d, wt_qkv, b_qkv, out_dtype=jnp.bfloat16)   # (RCB, 3E)

        # One bf16 relayout to head-major (C, R*D) matrices per (batch, head):
        # (R, C, B, 3, H, D) -> (3, B, H, C, R, D) -> (3, B, H, C, R*D).
        qkv6 = qkv.reshape(R, C, B, 3, H, D)
        qkv_hm = jnp.transpose(qkv6, (3, 2, 4, 1, 0, 5)).reshape(3, B, H, C, R * D)
        q_m, k_m, v_m = qkv_hm[0], qkv_hm[1], qkv_hm[2]

        ctx_m, probs = row_attention(q_m, k_m, v_m)      # (B,H,C,R*D), (H,B,C,C)

        # One bf16 relayout back to token order (r, c, b) for the out projection;
        # its output is then already (R, C, B, E) -> no trailing f32 transpose.
        ctx_tok = jnp.transpose(ctx_m.reshape(B, H, C, R, D),
                                (3, 2, 0, 1, 4)).reshape(R * C * B, E)
        wt_o = self.o_w.T.astype(jnp.bfloat16)
        out2d = linear(ctx_tok, wt_o, self.o_b.reshape(1, E), out_dtype=x.dtype)
        out = out2d.reshape(R, C, B, E)
        # probs kept f32 to match the PyTorch module; could be bf16/optional to
        # halve store traffic when attention maps are not consumed downstream.
        return out, probs                                # probs: 'hnij'


# ---------------------------- Pure-JAX reference -----------------------------

def reference(x, mod):
    R, C, B, E = x.shape
    H, D = mod.num_heads, mod.head_dim
    scaling = mod.scaling / math.sqrt(R)
    q = (x @ mod.q_w.T + mod.q_b).reshape(R, C, B, H, D) * scaling
    k = (x @ mod.k_w.T + mod.k_b).reshape(R, C, B, H, D)
    v = (x @ mod.v_w.T + mod.v_b).reshape(R, C, B, H, D)
    attn = jnp.einsum('rinhd,rjnhd->hnij', q, k)
    probs = jax.nn.softmax(attn, axis=-1)
    ctx = jnp.einsum('hnij,rjnhd->rinhd', probs, v).reshape(R, C, B, E)
    out = ctx @ mod.o_w.T + mod.o_b
    return out, probs


if __name__ == "__main__":
    key = jax.random.PRNGKey(0)
    kx, kp = jax.random.split(key)

    # Small MSA-like problem: rows=8, cols=16, batch=2, embed=32, heads=4.
    R, C, B, E, H = 8, 16, 2, 32, 4
    x = jax.random.normal(kx, (R, C, B, E), jnp.float32)

    mod = RowSelfAttentionPallas(E, H, kp)
    out, attn_probs = mod(x)
    jax.block_until_ready((out, attn_probs))

    ref_out, ref_probs = reference(x, mod)
    assert out.shape == (R, C, B, E) and attn_probs.shape == (H, B, C, C)
    assert jnp.allclose(out, ref_out, rtol=2e-2, atol=2e-2), "output mismatch"
    assert jnp.allclose(attn_probs, ref_probs, rtol=2e-2, atol=2e-2), "probs mismatch"

    print("KERNEL_OK")
</pallas_src>

<mosaic_0001>
module attributes {stable_mosaic.version = 11 : i64} {
  func.func @_linear_kernel(%arg0: i32, %arg1: memref<256x32xbf16, #tpu.memory_space<vmem>>, %arg2: memref<32x96xbf16, #tpu.memory_space<vmem>>, %arg3: memref<1x96xf32, #tpu.memory_space<vmem>>, %arg4: memref<256x96xbf16, #tpu.memory_space<vmem>>) attributes {dimension_semantics = [#tpu.dimension_semantics<parallel>], iteration_bounds = array<i64: 1>, scalar_prefetch = 0 : i64, scratch_operands = 0 : i64, tpu.core_type = #tpu.core_type<tc>, window_params = [{transform_indices = @transform_0, window_bounds = array<i64: 256, 32>}, {pipeline_mode = #tpu.pipeline_mode<synchronous>, transform_indices = @transform_1, window_bounds = array<i64: 32, 96>}, {pipeline_mode = #tpu.pipeline_mode<synchronous>, transform_indices = @transform_2, window_bounds = array<i64: 1, 96>}, {transform_indices = @transform_3, window_bounds = array<i64: 256, 96>}]} {
    %c0 = arith.constant 0 : index
    %c0_0 = arith.constant 0 : index
    %0 = vector.load %arg1[%c0, %c0_0] : memref<256x32xbf16, #tpu.memory_space<vmem>>, vector<256x32xbf16>
    %c0_1 = arith.constant 0 : index
    %c0_2 = arith.constant 0 : index
    %1 = vector.load %arg2[%c0_1, %c0_2] : memref<32x96xbf16, #tpu.memory_space<vmem>>, vector<32x96xbf16>
    %cst = arith.constant dense<0.000000e+00> : vector<256x96xf32>
    %2 = tpu.matmul %0, %1, %cst {dimension_numbers = #tpu.dot_dimension_numbers<[1], [0], [0], [1], [0, 0, 1, 1], [], []>} : vector<256x32xbf16>, vector<32x96xbf16>, vector<256x96xf32> -> vector<256x96xf32>
    %c0_3 = arith.constant 0 : index
    %c0_4 = arith.constant 0 : index
    %3 = vector.load %arg3[%c0_3, %c0_4] : memref<1x96xf32, #tpu.memory_space<vmem>>, vector<1x96xf32>
    %4 = vector.broadcast %3 : vector<1x96xf32> to vector<256x96xf32>
    %5 = arith.addf %2, %4 : vector<256x96xf32>
    %6 = arith.truncf %5 : vector<256x96xf32> to vector<256x96xbf16>
    %c0_5 = arith.constant 0 : index
    %c0_6 = arith.constant 0 : index
    %7 = vector.load %arg4[%c0_5, %c0_6] : memref<256x96xbf16, #tpu.memory_space<vmem>>, vector<256x96xbf16>
    tpu.vector_store %arg4[%c0_5, %c0_6], %6 {strides = array<i32>} : memref<256x96xbf16, #tpu.memory_space<vmem>>, vector<256x96xbf16>,
    return
  }
  func.func @transform_0(%arg0: i32) -> (i32, i32) {
    %c0_i32 = arith.constant 0 : i32
    %c0_i32_0 = arith.constant 0 : i32
    return %arg0, %c0_i32 : i32, i32
  }
  func.func @transform_1(%arg0: i32) -> (i32, i32) {
    %c0_i32 = arith.constant 0 : i32
    %c0_i32_0 = arith.constant 0 : i32
    %c0_i32_1 = arith.constant 0 : i32
    return %c0_i32, %c0_i32_0 : i32, i32
  }
  func.func @transform_2(%arg0: i32) -> (i32, i32) {
    %c0_i32 = arith.constant 0 : i32
    %c0_i32_0 = arith.constant 0 : i32
    %c0_i32_1 = arith.constant 0 : i32
    return %c0_i32, %c0_i32_0 : i32, i32
  }
  func.func @transform_3(%arg0: i32) -> (i32, i32) {
    %c0_i32 = arith.constant 0 : i32
    %c0_i32_0 = arith.constant 0 : i32
    return %arg0, %c0_i32 : i32, i32
  }
}

</mosaic_0001>

<llo_original>
// kernel: tpu_custom_call.1
$region0: #{tpu_custom_call.1}
  #allocation0 [shape = 'u32[]', space=smem, size = 0x4, offset = 0x4, fixed_abs, tag = 'smem constant byte address 0x4 - core index']
  #allocation1 [shape = 'u32[72,128]{1,0:T(1,128)}', space=vmem, size = 0x9000, scoped, tag = 'internal scratch']
  %s0 = inlined_call_operand.vmem [shape: bf16[256,32], index: 0, kind: input, shape index: {}]
  %s1 = inlined_call_operand.vmem [shape: bf16[32,96], index: 1, kind: input, shape index: {}]
  %s2 = inlined_call_operand.vmem [shape: f32[1,96], index: 2, kind: input, shape index: {}]
  %s3 = inlined_call_operand.vmem [shape: bf16[256,96], index: 3, kind: output, shape index: {}]
  %s4 = sld [smem:[#allocation0]]
  $region22: #{tpu_custom_call.1} parent=0
    _
  %s6 = ssub.s32 1, %s4
  %s7 = scalar_select 0, %s6, %s4
  // Predicated region
  $region2: #{tpu_custom_call.1} parent=0 // pred_check
    _
  $region3: #{tpu_custom_call.1} parent=0 // pred_check_branch
    %9 = sbr.rel (0) target = $region5
  $region4: #{tpu_custom_call.1} parent=0 // pred_region
    _
  $region5: #{tpu_custom_call.1} parent=0 // pred_fallthru
    _
  // Predicated region
  $region6: #{tpu_custom_call.1} parent=0 // pred_check
    _
  $region7: #{tpu_custom_call.1} parent=0 // pred_check_branch
    %11 = sbr.rel (0) target = $region9
  $region8: #{tpu_custom_call.1} parent=0 // pred_region
    _
  $region9: #{tpu_custom_call.1} parent=0 // pred_fallthru
    _
  // Predicated region
  $region10: #{tpu_custom_call.1} parent=0 // pred_check
    _
  $region11: #{tpu_custom_call.1} parent=0 // pred_check_branch
    %13 = sbr.rel (0) target = $region13
  $region12: #{tpu_custom_call.1} parent=0 // pred_region
    _
  $region13: #{tpu_custom_call.1} parent=0 // pred_fallthru
    _
  %v15 = vld [vmem:[%s0] sm:$0xf]
  %v16 = vld [vmem:[%s0 + $0x4] sm:$0xf]
  %v17 = vld [vmem:[%s0 + $0x8] sm:$0xf]
  %v18 = vld [vmem:[%s0 + $0xc] sm:$0xf]
  %v19 = vld [vmem:[%s0 + $0x10] sm:$0xf]
  %v20 = vld [vmem:[%s0 + $0x14] sm:$0xf]
  %v21 = vld [vmem:[%s0 + $0x18] sm:$0xf]
  %v22 = vld [vmem:[%s0 + $0x1c] sm:$0xf]
  %v23 = vld [vmem:[%s0 + $0x20] sm:$0xf]
  %v24 = vld [vmem:[%s0 + $0x24] sm:$0xf]
  %v25 = vld [vmem:[%s0 + $0x28] sm:$0xf]
  %v26 = vld [vmem:[%s0 + $0x2c] sm:$0xf]
  %v27 = vld [vmem:[%s0 + $0x30] sm:$0xf]
  %v28 = vld [vmem:[%s0 + $0x34] sm:$0xf]
  %v29 = vld [vmem:[%s0 + $0x38] sm:$0xf]
  %v30 = vld [vmem:[%s0 + $0x3c] sm:$0xf]
  %v31 = vld [vmem:[%s0 + $0x40] sm:$0xf]
  %v32 = vld [vmem:[%s0 + $0x44] sm:$0xf]
  %v33 = vld [vmem:[%s0 + $0x48] sm:$0xf]
  %v34 = vld [vmem:[%s0 + $0x4c] sm:$0xf]
  %v35 = vld [vmem:[%s0 + $0x50] sm:$0xf]
  %v36 = vld [vmem:[%s0 + $0x54] sm:$0xf]
  %v37 = vld [vmem:[%s0 + $0x58] sm:$0xf]
  %v38 = vld [vmem:[%s0 + $0x5c] sm:$0xf]
  %v39 = vld [vmem:[%s0 + $0x60] sm:$0xf]
  %v40 = vld [vmem:[%s0 + $0x64] sm:$0xf]
  %v41 = vld [vmem:[%s0 + $0x68] sm:$0xf]
  %v42 = vld [vmem:[%s0 + $0x6c] sm:$0xf]
  %v43 = vld [vmem:[%s0 + $0x70] sm:$0xf]
  %v44 = vld [vmem:[%s0 + $0x74] sm:$0xf]
  %v45 = vld [vmem:[%s0 + $0x78] sm:$0xf]
  %v46 = vld [vmem:[%s0 + $0x7c] sm:$0xf]
  %v47 = vld [vmem:[%s1] sm:$0xf]
  %v48 = vld [vmem:[%s1 + $0x4] sm:$0xf]
  %v49 = vld [vmem:[%s1 + $0x8] sm:$0xf]
  %v50 = vld [vmem:[%s1 + $0xc] sm:$0xf]
  %v51 = vld [vmem:[%s2] sm:$0x1]
  %v53 = vperm.slane %v51, 0
  %v87 = vunpack.c.l.b16 %v15
  %v88 = vunpack.c.l.b16 %v16
  %v89 = vunpack.c.l.b16 %v17
  %v90 = vunpack.c.l.b16 %v18
  %v91 = vunpack.c.l.b16 %v19
  %v92 = vunpack.c.l.b16 %v20
  %v93 = vunpack.c.l.b16 %v21
  %v94 = vunpack.c.l.b16 %v22
  %v95 = vunpack.c.l.b16 %v23
  %v96 = vunpack.c.l.b16 %v24
  %v97 = vunpack.c.l.b16 %v25
  %v98 = vunpack.c.l.b16 %v26
  %v99 = vunpack.c.l.b16 %v27
  %v100 = vunpack.c.l.b16 %v28
  %v101 = vunpack.c.l.b16 %v29
  %v102 = vunpack.c.l.b16 %v30
  %v103 = vunpack.c.l.b16 %v31
  %v104 = vunpack.c.l.b16 %v32
  %v105 = vunpack.c.l.b16 %v33
  %v106 = vunpack.c.l.b16 %v34
  %v107 = vunpack.c.l.b16 %v35
  %v108 = vunpack.c.l.b16 %v36
  %v109 = vunpack.c.l.b16 %v37
  %v110 = vunpack.c.l.b16 %v38
  %v111 = vunpack.c.l.b16 %v39
  %v112 = vunpack.c.l.b16 %v40
  %v113 = vunpack.c.l.b16 %v41
  %v114 = vunpack.c.l.b16 %v42
  %v115 = vunpack.c.l.b16 %v43
  %v116 = vunpack.c.l.b16 %v44
  %v117 = vunpack.c.l.b16 %v45
  %v118 = vunpack.c.l.b16 %v46
  %v119 = vpack.c.b16 %v88, %v87
  %v120 = vpack.c.b16 %v90, %v89
  %v121 = vpack.c.b16 %v92, %v91
  %v122 = vpack.c.b16 %v94, %v93
  %v123 = vpack.c.b16 %v96, %v95
  %v124 = vpack.c.b16 %v98, %v97
  %v125 = vpack.c.b16 %v100, %v99
  %v126 = vpack.c.b16 %v102, %v101
  %v127 = vpack.c.b16 %v104, %v103
  %v128 = vpack.c.b16 %v106, %v105
  %v129 = vpack.c.b16 %v108, %v107
  %v130 = vpack.c.b16 %v110, %v109
  %v131 = vpack.c.b16 %v112, %v111
  %v132 = vpack.c.b16 %v114, %v113
  %v133 = vpack.c.b16 %v116, %v115
  %v134 = vpack.c.b16 %v118, %v117
  %v139 = vunpack.c.l.b16 %v47
  %v140 = vunpack.c.l.b16 %v48
  %v141 = vunpack.c.l.b16 %v49
  %v142 = vunpack.c.l.b16 %v50
  %v143 = vpack.c.b16 %v140, %v139
  %v144 = vpack.c.b16 %v142, %v141
  %vm147 = vcmask 261120
  %v149 = vsel %vm147, %v119, 0
  %v152 = vsel %vm147, %v120, 0
  %v155 = vsel %vm147, %v121, 0
  %v158 = vsel %vm147, %v122, 0
  %v161 = vsel %vm147, %v123, 0
  %v164 = vsel %vm147, %v124, 0
  %v167 = vsel %vm147, %v125, 0
  %v170 = vsel %vm147, %v126, 0
  %v173 = vsel %vm147, %v127, 0
  %v176 = vsel %vm147, %v128, 0
  %v179 = vsel %vm147, %v129, 0
  %v182 = vsel %vm147, %v130, 0
  %v185 = vsel %vm147, %v131, 0
  %v188 = vsel %vm147, %v132, 0
  %v191 = vsel %vm147, %v133, 0
  %v194 = vsel %vm147, %v134, 0
  %196 = vmatpush.bf16.msra.mxu0 0
  %197 = vmatpush.bf16.msra.mxu0 0
  %198 = vmatpush.bf16.msra.mxu0 0
  %199 = vmatpush.bf16.msra.mxu0 0
  %200 = vmatpush.bf16.msra.mxu0 0
  %201 = vmatpush.bf16.msra.mxu0 0
  %202 = vmatpush.bf16.msra.mxu0 %v144
  %203 = vmatpush.bf16.msra.mxu0 %v143
  %204 = vmatmul.bf16.gmra.mxu0 %v149
  %v205 = vpop.f32.mrf.mxu0
  %v206 = vadd.f32 %v53, %v205
  %v207 = vpop.f32.mrf.mxu0
  %v208 = vadd.f32 %v53, %v207
  %209 = vmatmul.bf16.gmra.mxu0 %v152
  %v210 = vpop.f32.mrf.mxu0
  %v211 = vadd.f32 %v53, %v210
  %v212 = vpop.f32.mrf.mxu0
  %v213 = vadd.f32 %v53, %v212
  %214 = vmatmul.bf16.gmra.mxu0 %v155
  %v215 = vpop.f32.mrf.mxu0
  %v216 = vadd.f32 %v53, %v215
  %v217 = vpop.f32.mrf.mxu0
  %v218 = vadd.f32 %v53, %v217
  %219 = vmatmul.bf16.gmra.mxu0 %v158
  %v220 = vpop.f32.mrf.mxu0
  %v221 = vadd.f32 %v53, %v220
  %v222 = vpop.f32.mrf.mxu0
  %v223 = vadd.f32 %v53, %v222
  %224 = vmatmul.bf16.gmra.mxu0 %v161
  %v225 = vpop.f32.mrf.mxu0
  %v226 = vadd.f32 %v53, %v225
  %v227 = vpop.f32.mrf.mxu0
  %v228 = vadd.f32 %v53, %v227
  %229 = vmatmul.bf16.gmra.mxu0 %v164
  %v230 = vpop.f32.mrf.mxu0
  %v231 = vadd.f32 %v53, %v230
  %v232 = vpop.f32.mrf.mxu0
  %v233 = vadd.f32 %v53, %v232
  %234 = vmatmul.bf16.gmra.mxu0 %v167
  %v235 = vpop.f32.mrf.mxu0
  %v236 = vadd.f32 %v53, %v235
  %v237 = vpop.f32.mrf.mxu0
  %v238 = vadd.f32 %v53, %v237
  %239 = vmatmul.bf16.gmra.mxu0 %v170
  %v240 = vpop.f32.mrf.mxu0
  %v241 = vadd.f32 %v53, %v240
  %v242 = vpop.f32.mrf.mxu0
  %v243 = vadd.f32 %v53, %v242
  %244 = vmatmul.bf16.gmra.mxu0 %v173
  %v245 = vpop.f32.mrf.mxu0
  %v246 = vadd.f32 %v53, %v245
  %v247 = vpop.f32.mrf.mxu0
  %v248 = vadd.f32 %v53, %v247
  %249 = vmatmul.bf16.gmra.mxu0 %v176
  %v250 = vpop.f32.mrf.mxu0
  %v251 = vadd.f32 %v53, %v250
  %v252 = vpop.f32.mrf.mxu0
  %v253 = vadd.f32 %v53, %v252
  %254 = vmatmul.bf16.gmra.mxu0 %v179
  %v255 = vpop.f32.mrf.mxu0
  %v256 = vadd.f32 %v53, %v255
  %v257 = vpop.f32.mrf.mxu0
  %v258 = vadd.f32 %v53, %v257
  %259 = vmatmul.bf16.gmra.mxu0 %v182
  %v260 = vpop.f32.mrf.mxu0
  %v261 = vadd.f32 %v53, %v260
  %v262 = vpop.f32.mrf.mxu0
  %v263 = vadd.f32 %v53, %v262
  %264 = vmatmul.bf16.gmra.mxu0 %v185
  %v265 = vpop.f32.mrf.mxu0
  %v266 = vadd.f32 %v53, %v265
  %v267 = vpop.f32.mrf.mxu0
  %v268 = vadd.f32 %v53, %v267
  %269 = vmatmul.bf16.gmra.mxu0 %v188
  %v270 = vpop.f32.mrf.mxu0
  %v271 = vadd.f32 %v53, %v270
  %v272 = vpop.f32.mrf.mxu0
  %v273 = vadd.f32 %v53, %v272
  %274 = vmatmul.bf16.gmra.mxu0 %v191
  %v275 = vpop.f32.mrf.mxu0
  %v276 = vadd.f32 %v53, %v275
  %v277 = vpop.f32.mrf.mxu0
  %v278 = vadd.f32 %v53, %v277
  %279 = vmatmul.bf16.gmra.mxu0 %v194
  %v280 = vpop.f32.mrf.mxu0
  %v281 = vadd.f32 %v53, %v280
  %v282 = vpop.f32.mrf.mxu0
  %v283 = vadd.f32 %v53, %v282
  %284 = vdwg.mxu0
  %v285 = vpack.c.bf16 %v206, %v206
  %v286 = vpack.c.bf16 %v208, %v208
  %v287 = vpack.c.bf16 %v211, %v211
  %v288 = vpack.c.bf16 %v213, %v213
  %v289 = vpack.c.bf16 %v216, %v216
  %v290 = vpack.c.bf16 %v218, %v218
  %v291 = vpack.c.bf16 %v221, %v221
  %v292 = vpack.c.bf16 %v223, %v223
  %v293 = vpack.c.bf16 %v226, %v226
  %v294 = vpack.c.bf16 %v228, %v228
  %v295 = vpack.c.bf16 %v231, %v231
  %v296 = vpack.c.bf16 %v233, %v233
  %v297 = vpack.c.bf16 %v236, %v236
  %v298 = vpack.c.bf16 %v238, %v238
  %v299 = vpack.c.bf16 %v241, %v241
  %v300 = vpack.c.bf16 %v243, %v243
  %v301 = vpack.c.bf16 %v246, %v246
  %v302 = vpack.c.bf16 %v248, %v248
  %v303 = vpack.c.bf16 %v251, %v251
  %v304 = vpack.c.bf16 %v253, %v253
  %v305 = vpack.c.bf16 %v256, %v256
  %v306 = vpack.c.bf16 %v258, %v258
  %v307 = vpack.c.bf16 %v261, %v261
  %v308 = vpack.c.bf16 %v263, %v263
  %v309 = vpack.c.bf16 %v266, %v266
  %v310 = vpack.c.bf16 %v268, %v268
  %v311 = vpack.c.bf16 %v271, %v271
  %v312 = vpack.c.bf16 %v273, %v273
  %v313 = vpack.c.bf16 %v276, %v276
  %v314 = vpack.c.bf16 %v278, %v278
  %v315 = vpack.c.bf16 %v281, %v281
  %v316 = vpack.c.bf16 %v283, %v283
  %vm317 = vcmask 781312
  %318 = vst.msk [vmem:[%s3] sm:$0xf] %vm317, %v285
  %319 = vst.msk [vmem:[%s3 + $0x4] sm:$0xf] %vm317, %v286
  %320 = vst.msk [vmem:[%s3 + $0x8] sm:$0xf] %vm317, %v287
  %321 = vst.msk [vmem:[%s3 + $0xc] sm:$0xf] %vm317, %v288
  %322 = vst.msk [vmem:[%s3 + $0x10] sm:$0xf] %vm317, %v289
  %323 = vst.msk [vmem:[%s3 + $0x14] sm:$0xf] %vm317, %v290
  %324 = vst.msk [vmem:[%s3 + $0x18] sm:$0xf] %vm317, %v291
  %325 = vst.msk [vmem:[%s3 + $0x1c] sm:$0xf] %vm317, %v292
  %326 = vst.msk [vmem:[%s3 + $0x20] sm:$0xf] %vm317, %v293
  %327 = vst.msk [vmem:[%s3 + $0x24] sm:$0xf] %vm317, %v294
  %328 = vst.msk [vmem:[%s3 + $0x28] sm:$0xf] %vm317, %v295
  %329 = vst.msk [vmem:[%s3 + $0x2c] sm:$0xf] %vm317, %v296
  %330 = vst.msk [vmem:[%s3 + $0x30] sm:$0xf] %vm317, %v297
  %331 = vst.msk [vmem:[%s3 + $0x34] sm:$0xf] %vm317, %v298
  %332 = vst.msk [vmem:[%s3 + $0x38] sm:$0xf] %vm317, %v299
  %333 = vst.msk [vmem:[%s3 + $0x3c] sm:$0xf] %vm317, %v300
  %334 = vst.msk [vmem:[%s3 + $0x40] sm:$0xf] %vm317, %v301
  %335 = vst.msk [vmem:[%s3 + $0x44] sm:$0xf] %vm317, %v302
  %336 = vst.msk [vmem:[%s3 + $0x48] sm:$0xf] %vm317, %v303
  %337 = vst.msk [vmem:[%s3 + $0x4c] sm:$0xf] %vm317, %v304
  %338 = vst.msk [vmem:[%s3 + $0x50] sm:$0xf] %vm317, %v305
  %339 = vst.msk [vmem:[%s3 + $0x54] sm:$0xf] %vm317, %v306
  %340 = vst.msk [vmem:[%s3 + $0x58] sm:$0xf] %vm317, %v307
  %341 = vst.msk [vmem:[%s3 + $0x5c] sm:$0xf] %vm317, %v308
  %342 = vst.msk [vmem:[%s3 + $0x60] sm:$0xf] %vm317, %v309
  %343 = vst.msk [vmem:[%s3 + $0x64] sm:$0xf] %vm317, %v310
  %344 = vst.msk [vmem:[%s3 + $0x68] sm:$0xf] %vm317, %v311
  %345 = vst.msk [vmem:[%s3 + $0x6c] sm:$0xf] %vm317, %v312
  %346 = vst.msk [vmem:[%s3 + $0x70] sm:$0xf] %vm317, %v313
  %347 = vst.msk [vmem:[%s3 + $0x74] sm:$0xf] %vm317, %v314
  %348 = vst.msk [vmem:[%s3 + $0x78] sm:$0xf] %vm317, %v315
  %349 = vst.msk [vmem:[%s3 + $0x7c] sm:$0xf] %vm317, %v316
  // Predicated region
  $region14: #{tpu_custom_call.1} parent=0 // pred_check
    _
  $region15: #{tpu_custom_call.1} parent=0 // pred_check_branch
    %351 = sbr.rel (0) target = $region17
  $region16: #{tpu_custom_call.1} parent=0 // pred_region
    _
  $region17: #{tpu_custom_call.1} parent=0 // pred_fallthru
    _
  // Predicated region
  $region18: #{tpu_custom_call.1} parent=0 // pred_check
    _
  $region19: #{tpu_custom_call.1} parent=0 // pred_check_branch
    %353 = sbr.rel (0) target = $region21
  $region20: #{tpu_custom_call.1} parent=0 // pred_region
    _
  $region21: #{tpu_custom_call.1} parent=0 // pred_fallthru
    _

</llo_original>
